<compile_context>
chip_gen: v7x
topology: tpu7x:2x2x1
jax: 0.10.0
libtpu: 0.0.40
codegen_flags: <defaults>
</compile_context>

<pallas_src>
import functools

import jax
import jax.numpy as jnp
from jax.experimental import pallas as pl
from jax.experimental.pallas import tpu as pltpu


def _round_up(v, m):
    return (v + m - 1) // m * m


def _simple_workspace_kernel(x_ref, w1_ref, b1_ref, w2_ref, b2_ref,
                             out_ref, mean_ref, *, inv_s):
    # x_ref:  (BT, S, Dp)   streamed per grid step (double-buffered)
    # w1_ref: (Dp, Hp), b1_ref: (1, Hp)   resident (constant index_map)
    # w2_ref: (Hp, Op), b2_ref: (1, Op)   resident
    # out_ref: (BT, Op), mean_ref: (BT, Dp)   lane-dense (padded to 128)
    x = x_ref[...]                                        # f32 (BT, S, Dp)

    # mean over dim=1: pure add reduction + one scale by 1/S
    x_mean = jnp.sum(x, axis=1) * inv_s                   # (BT, Dp)
    mean_ref[...] = x_mean.astype(mean_ref.dtype)

    # fc1 + ReLU (MXU, f32 accumulate)
    h = jnp.dot(x_mean, w1_ref[...],
                preferred_element_type=jnp.float32) + b1_ref[...]
    h = jnp.maximum(h, 0.0)                               # (BT, Hp)

    # fc2
    out = jnp.dot(h, w2_ref[...],
                  preferred_element_type=jnp.float32) + b2_ref[...]
    out_ref[...] = out.astype(out_ref.dtype)              # (BT, Op)


def make_simple_workspace(w1, b1, w2, b2):
    """Prepare (transpose + pad) the fc1/fc2 parameters ONCE and return a
    jitted forward function x -> (output, x_mean).

    w1: (H, D), b1: (H,)   -- PyTorch nn.Linear layout
    w2: (O, H), b2: (O,)
    """
    H, D = w1.shape
    O = w2.shape[0]
    Dp = _round_up(D, 128)
    Hp = _round_up(H, 128)
    Op = _round_up(O, 128)

    # (in, out) layout, zero-padded to lane-dense sizes. Zero padding is
    # mathematically inert for the linear layers and the ReLU.
    w1_t = jnp.zeros((Dp, Hp), jnp.float32).at[:D, :H].set(
        jnp.asarray(w1, jnp.float32).T)
    b1_p = jnp.zeros((1, Hp), jnp.float32).at[0, :H].set(
        jnp.asarray(b1, jnp.float32))
    w2_t = jnp.zeros((Hp, Op), jnp.float32).at[:H, :O].set(
        jnp.asarray(w2, jnp.float32).T)
    b2_p = jnp.zeros((1, Op), jnp.float32).at[0, :O].set(
        jnp.asarray(b2, jnp.float32))

    @jax.jit
    def forward(x):
        B, S, D_in = x.shape
        assert D_in == D, "input feature dim mismatch"

        # --- choose the batch tile against a conservative VMEM budget ------
        # (v7x: 64 MiB physical VMEM; keep x double-buffer well under it)
        budget = 24 << 20                       # bytes for the x double-buffer
        x_row_bytes = 2 * S * Dp * 4            # 2 buffers, f32
        BT = 128 if B >= 128 else _round_up(max(B, 1), 8)
        while BT > 8 and BT * x_row_bytes > budget:
            BT //= 2
        Bp = _round_up(B, BT)

        # zero-pad x to (Bp, S, Dp); padded rows/features are sliced off below
        xp = jnp.zeros((Bp, S, Dp), jnp.float32).at[:B, :, :D].set(
            x.astype(jnp.float32))

        # explicit scoped-VMEM limit sized from the chosen tiles (+ headroom)
        need = 4 * (2 * BT * S * Dp                      # x (double-buffered)
                    + 2 * (Dp * Hp + Hp + Hp * Op + Op)  # resident weights
                    + 2 * BT * Op + 2 * BT * Dp)         # outputs
        vmem_limit = min(max(int(need * 1.5) + (2 << 20), 16 << 20), 64 << 20)

        kernel = functools.partial(_simple_workspace_kernel, inv_s=1.0 / S)

        out_p, mean_p = pl.pallas_call(
            kernel,
            grid=(Bp // BT,),
            in_specs=[
                pl.BlockSpec((BT, S, Dp), lambda i: (i, 0, 0)),   # x: streamed
                pl.BlockSpec((Dp, Hp), lambda i: (0, 0)),         # w1: resident
                pl.BlockSpec((1, Hp), lambda i: (0, 0)),          # b1
                pl.BlockSpec((Hp, Op), lambda i: (0, 0)),         # w2
                pl.BlockSpec((1, Op), lambda i: (0, 0)),          # b2
            ],
            out_specs=(
                pl.BlockSpec((BT, Op), lambda i: (i, 0)),         # output
                pl.BlockSpec((BT, Dp), lambda i: (i, 0)),         # x_mean
            ),
            out_shape=(
                jax.ShapeDtypeStruct((Bp, Op), jnp.float32),
                jax.ShapeDtypeStruct((Bp, Dp), jnp.float32),
            ),
            compiler_params=pltpu.CompilerParams(
                dimension_semantics=("parallel",),   # shard batch over TCs (v7x)
                vmem_limit_bytes=vmem_limit,
            ),
        )(xp, w1_t, b1_p, w2_t, b2_p)

        # slice away the lane/sublane padding
        return out_p[:B, :O], mean_p[:B, :D]

    return forward


if __name__ == "__main__":
    # Small shapes consistent with the forward pass: x is (batch, seq, input_dim).
    B, S = 2, 8
    input_dim, hidden_dim, output_dim = 32, 64, 16

    key = jax.random.PRNGKey(0)
    kx, kw1, kb1, kw2, kb2 = jax.random.split(key, 5)

    x = jax.random.normal(kx, (B, S, input_dim), dtype=jnp.float32)
    # Deterministic synthetic parameters (shapes from nn.Linear).
    w1 = jax.random.normal(kw1, (hidden_dim, input_dim), dtype=jnp.float32) * 0.1
    b1 = jax.random.normal(kb1, (hidden_dim,), dtype=jnp.float32) * 0.1
    w2 = jax.random.normal(kw2, (output_dim, hidden_dim), dtype=jnp.float32) * 0.1
    b2 = jax.random.normal(kb2, (output_dim,), dtype=jnp.float32) * 0.1

    # Parameters prepared once (transpose + pad happen outside the hot path).
    simple_workspace = make_simple_workspace(w1, b1, w2, b2)

    out, x_mean = simple_workspace(x)
    jax.block_until_ready((out, x_mean))

    # Pure-JAX reference check.
    x_mean_ref = jnp.mean(x, axis=1)
    h_ref = jnp.maximum(x_mean_ref @ w1.T + b1, 0.0)
    out_ref = h_ref @ w2.T + b2
    assert out.shape == (B, output_dim) and x_mean.shape == (B, input_dim)
    assert jnp.allclose(x_mean, x_mean_ref, atol=1e-5), "mean mismatch"
    assert jnp.allclose(out, out_ref, atol=1e-4), "output mismatch"

    print("KERNEL_OK")
</pallas_src>

<mosaic_0001>
module attributes {stable_mosaic.version = 11 : i64} {
  func.func @_simple_workspace_kernel(%arg0: i32, %arg1: memref<8x8x128xf32, #tpu.memory_space<vmem>>, %arg2: memref<128x128xf32, #tpu.memory_space<vmem>>, %arg3: memref<1x128xf32, #tpu.memory_space<vmem>>, %arg4: memref<128x128xf32, #tpu.memory_space<vmem>>, %arg5: memref<1x128xf32, #tpu.memory_space<vmem>>, %arg6: memref<8x128xf32, #tpu.memory_space<vmem>>, %arg7: memref<8x128xf32, #tpu.memory_space<vmem>>) attributes {dimension_semantics = [#tpu.dimension_semantics<parallel>], iteration_bounds = array<i64: 1>, scalar_prefetch = 0 : i64, scratch_operands = 0 : i64, tpu.core_type = #tpu.core_type<tc>, window_params = [{transform_indices = @transform_0, window_bounds = array<i64: 8, 8, 128>}, {pipeline_mode = #tpu.pipeline_mode<synchronous>, transform_indices = @transform_1, window_bounds = array<i64: 128, 128>}, {pipeline_mode = #tpu.pipeline_mode<synchronous>, transform_indices = @transform_2, window_bounds = array<i64: 1, 128>}, {pipeline_mode = #tpu.pipeline_mode<synchronous>, transform_indices = @transform_3, window_bounds = array<i64: 128, 128>}, {pipeline_mode = #tpu.pipeline_mode<synchronous>, transform_indices = @transform_4, window_bounds = array<i64: 1, 128>}, {transform_indices = @transform_5, window_bounds = array<i64: 8, 128>}, {transform_indices = @transform_6, window_bounds = array<i64: 8, 128>}]} {
    %c0 = arith.constant 0 : index
    %c0_0 = arith.constant 0 : index
    %c0_1 = arith.constant 0 : index
    %0 = vector.load %arg1[%c0, %c0_0, %c0_1] : memref<8x8x128xf32, #tpu.memory_space<vmem>>, vector<8x8x128xf32>
    %cst = arith.constant dense<0.000000e+00> : vector<8x128xf32>
    %1 = vector.multi_reduction <add>, %0, %cst [1] : vector<8x8x128xf32> to vector<8x128xf32>
    %cst_2 = arith.constant 1.250000e-01 : f32
    %2 = vector.broadcast %cst_2 : f32 to vector<8x128xf32>
    %3 = arith.mulf %1, %2 : vector<8x128xf32>
    %c0_3 = arith.constant 0 : index
    %c0_4 = arith.constant 0 : index
    %4 = vector.load %arg7[%c0_3, %c0_4] : memref<8x128xf32, #tpu.memory_space<vmem>>, vector<8x128xf32>
    tpu.vector_store %arg7[%c0_3, %c0_4], %3 {strides = array<i32>} : memref<8x128xf32, #tpu.memory_space<vmem>>, vector<8x128xf32>,
    %c0_5 = arith.constant 0 : index
    %c0_6 = arith.constant 0 : index
    %5 = vector.load %arg2[%c0_5, %c0_6] : memref<128x128xf32, #tpu.memory_space<vmem>>, vector<128x128xf32>
    %cst_7 = arith.constant dense<0.000000e+00> : vector<8x128xf32>
    %6 = tpu.matmul %3, %5, %cst_7 {dimension_numbers = #tpu.dot_dimension_numbers<[1], [0], [0], [1], [0, 0, 1, 1], [], []>} : vector<8x128xf32>, vector<128x128xf32>, vector<8x128xf32> -> vector<8x128xf32>
    %c0_8 = arith.constant 0 : index
    %c0_9 = arith.constant 0 : index
    %7 = vector.load %arg3[%c0_8, %c0_9] : memref<1x128xf32, #tpu.memory_space<vmem>>, vector<1x128xf32>
    %8 = vector.broadcast %7 : vector<1x128xf32> to vector<8x128xf32>
    %9 = arith.addf %6, %8 : vector<8x128xf32>
    %cst_10 = arith.constant 0.000000e+00 : f32
    %10 = vector.broadcast %cst_10 : f32 to vector<8x128xf32>
    %11 = arith.maximumf %9, %10 : vector<8x128xf32>
    %c0_11 = arith.constant 0 : index
    %c0_12 = arith.constant 0 : index
    %12 = vector.load %arg4[%c0_11, %c0_12] : memref<128x128xf32, #tpu.memory_space<vmem>>, vector<128x128xf32>
    %cst_13 = arith.constant dense<0.000000e+00> : vector<8x128xf32>
    %13 = tpu.matmul %11, %12, %cst_13 {dimension_numbers = #tpu.dot_dimension_numbers<[1], [0], [0], [1], [0, 0, 1, 1], [], []>} : vector<8x128xf32>, vector<128x128xf32>, vector<8x128xf32> -> vector<8x128xf32>
    %c0_14 = arith.constant 0 : index
    %c0_15 = arith.constant 0 : index
    %14 = vector.load %arg5[%c0_14, %c0_15] : memref<1x128xf32, #tpu.memory_space<vmem>>, vector<1x128xf32>
    %15 = vector.broadcast %14 : vector<1x128xf32> to vector<8x128xf32>
    %16 = arith.addf %13, %15 : vector<8x128xf32>
    %c0_16 = arith.constant 0 : index
    %c0_17 = arith.constant 0 : index
    %17 = vector.load %arg6[%c0_16, %c0_17] : memref<8x128xf32, #tpu.memory_space<vmem>>, vector<8x128xf32>
    tpu.vector_store %arg6[%c0_16, %c0_17], %16 {strides = array<i32>} : memref<8x128xf32, #tpu.memory_space<vmem>>, vector<8x128xf32>,
    return
  }
  func.func @transform_0(%arg0: i32) -> (i32, i32, i32) {
    %c0_i32 = arith.constant 0 : i32
    %c0_i32_0 = arith.constant 0 : i32
    %c0_i32_1 = arith.constant 0 : i32
    return %arg0, %c0_i32, %c0_i32_0 : i32, i32, i32
  }
  func.func @transform_1(%arg0: i32) -> (i32, i32) {
    %c0_i32 = arith.constant 0 : i32
    %c0_i32_0 = arith.constant 0 : i32
    %c0_i32_1 = arith.constant 0 : i32
    return %c0_i32, %c0_i32_0 : i32, i32
  }
  func.func @transform_2(%arg0: i32) -> (i32, i32) {
    %c0_i32 = arith.constant 0 : i32
    %c0_i32_0 = arith.constant 0 : i32
    %c0_i32_1 = arith.constant 0 : i32
    return %c0_i32, %c0_i32_0 : i32, i32
  }
  func.func @transform_3(%arg0: i32) -> (i32, i32) {
    %c0_i32 = arith.constant 0 : i32
    %c0_i32_0 = arith.constant 0 : i32
    %c0_i32_1 = arith.constant 0 : i32
    return %c0_i32, %c0_i32_0 : i32, i32
  }
  func.func @transform_4(%arg0: i32) -> (i32, i32) {
    %c0_i32 = arith.constant 0 : i32
    %c0_i32_0 = arith.constant 0 : i32
    %c0_i32_1 = arith.constant 0 : i32
    return %c0_i32, %c0_i32_0 : i32, i32
  }
  func.func @transform_5(%arg0: i32) -> (i32, i32) {
    %c0_i32 = arith.constant 0 : i32
    %c0_i32_0 = arith.constant 0 : i32
    return %arg0, %c0_i32 : i32, i32
  }
  func.func @transform_6(%arg0: i32) -> (i32, i32) {
    %c0_i32 = arith.constant 0 : i32
    %c0_i32_0 = arith.constant 0 : i32
    return %arg0, %c0_i32 : i32, i32
  }
}

</mosaic_0001>

<llo_original>
// kernel: forward.1
$region0: #{forward.1}
  #allocation0 [shape = 'u32[]', space=smem, size = 0x4, offset = 0x4, fixed_abs, tag = 'smem constant byte address 0x4 - core index']
  #allocation1 [shape = 'u32[144,128]{1,0:T(1,128)}', space=vmem, size = 0x12000, scoped, tag = 'internal scratch']
  %s0 = inlined_call_operand.vmem [shape: f32[8,8,128], index: 0, kind: input, shape index: {}]
  %s1 = inlined_call_operand.hbm [shape: f32[128,128], index: 1, kind: input, shape index: {}]
  %s2 = inlined_call_operand.vmem [shape: f32[1,128], index: 2, kind: input, shape index: {}]
  %s3 = inlined_call_operand.hbm [shape: f32[128,128], index: 3, kind: input, shape index: {}]
  %s4 = inlined_call_operand.vmem [shape: f32[1,128], index: 4, kind: input, shape index: {}]
  %s5 = inlined_call_operand.vmem [shape: f32[8,128], index: 5, kind: output, shape index: {0}]
  %s6 = inlined_call_operand.vmem [shape: f32[8,128], index: 6, kind: output, shape index: {1}]
  %7 = xla_tuple %s5, %s6
  %s8 = sld [smem:[#allocation0]]
  $region46: #{forward.1} parent=0
    _
  %s10 = ssub.s32 1, %s8
  %s11 = scalar_select 0, %s10, %s8
  $region1: #{forward.1} parent=0
    #allocation2 [shape = 'u8[65536]{0}', space=vmem, size = 0x10000, scoped, tag = 'input window, operand 1, single buffered']
    #allocation3 [shape = 's32[1]{0}', space=sflag, size = 0x4, scoped, tag = 'scoped memory for forward.1']
    #allocation4 [shape = 'u8[65536]{0}', space=vmem, size = 0x10000, scoped, tag = 'input window, operand 3, single buffered']
    #allocation5 [shape = 's32[1]{0}', space=sflag, size = 0x4, scoped, tag = 'scoped memory for forward.1']
    %12 = vsyncpa [#allocation3], 0
    %13 = vsyncpa [#allocation5], 0
    // Predicated region
    $region2: #{forward.1} parent=1 // pred_check
      _
    $region3: #{forward.1} parent=1 // pred_check_branch
      %15 = sbr.rel (0) target = $region5
    $region4: #{forward.1} parent=1 // pred_region
      _
    $region5: #{forward.1} parent=1 // pred_fallthru
      _
    // Predicated region
    $region6: #{forward.1} parent=1 // pred_check
      _
    $region7: #{forward.1} parent=1 // pred_check_branch
      %17 = sbr.rel (0) target = $region9
    $region8: #{forward.1} parent=1 // pred_region
      %s19 = ssub.s32 2048, 2048
      %20 = vsyncadd [#allocation3], %s19
      %s21 = sshll.u32 [#allocation2], 4
      %s22 = int_to_ptr.vmem [resolvable:$true] %s21
      %27 = dma.hbm_to_vmem [thread:$0]  %s1, 2048, %s22, [#allocation3], 128, 128, 8
    $region9: #{forward.1} parent=1 // pred_fallthru
      _
    // Predicated region
    $region10: #{forward.1} parent=1 // pred_check
      _
    $region11: #{forward.1} parent=1 // pred_check_branch
      %29 = sbr.rel (0) target = $region13
    $region12: #{forward.1} parent=1 // pred_region
      _
    $region13: #{forward.1} parent=1 // pred_fallthru
      _
    // Predicated region
    $region14: #{forward.1} parent=1 // pred_check
      _
    $region15: #{forward.1} parent=1 // pred_check_branch
      %31 = sbr.rel (0) target = $region17
    $region16: #{forward.1} parent=1 // pred_region
      %s33 = ssub.s32 2048, 2048
      %34 = vsyncadd [#allocation5], %s33
      %s35 = sshll.u32 [#allocation4], 4
      %s36 = int_to_ptr.vmem [resolvable:$true] %s35
      %41 = dma.hbm_to_vmem [thread:$0]  %s3, 2048, %s36, [#allocation5], 128, 128, 8
    $region17: #{forward.1} parent=1 // pred_fallthru
      _
    // Predicated region
    $region18: #{forward.1} parent=1 // pred_check
      _
    $region19: #{forward.1} parent=1 // pred_check_branch
      %43 = sbr.rel (0) target = $region21
    $region20: #{forward.1} parent=1 // pred_region
      _
    $region21: #{forward.1} parent=1 // pred_fallthru
      _
    // Predicated region
    $region22: #{forward.1} parent=1 // pred_check
      _
    $region23: #{forward.1} parent=1 // pred_check_branch
      %45 = sbr.rel (0) target = $region25
    $region24: #{forward.1} parent=1 // pred_region
      %46 = dma.done [#allocation3], 2048
    $region25: #{forward.1} parent=1 // pred_fallthru
      _
    // Predicated region
    $region26: #{forward.1} parent=1 // pred_check
      _
    $region27: #{forward.1} parent=1 // pred_check_branch
      %48 = sbr.rel (0) target = $region29
    $region28: #{forward.1} parent=1 // pred_region
      %49 = dma.done [#allocation5], 2048
    $region29: #{forward.1} parent=1 // pred_fallthru
      _
    %v50 = vld [vmem:[%s0] sm:$0xff]
    %v51 = vld [vmem:[%s0 + $0x8] sm:$0xff]
    %v52 = vld [vmem:[%s0 + $0x10] sm:$0xff]
    %v53 = vld [vmem:[%s0 + $0x18] sm:$0xff]
    %v54 = vld [vmem:[%s0 + $0x20] sm:$0xff]
    %v55 = vld [vmem:[%s0 + $0x28] sm:$0xff]
    %v56 = vld [vmem:[%s0 + $0x30] sm:$0xff]
    %v57 = vld [vmem:[%s0 + $0x38] sm:$0xff]
    %v58 = vrot.slane %v50, 4
    %v59 = vadd.f32 %v50, %v58
    %v60 = vrot.slane %v59, 2
    %v61 = vadd.f32 %v59, %v60
    %v62 = vrot.slane %v61, 1
    %v63 = vadd.f32 %v61, %v62
    %v64 = vrot.slane %v51, 4
    %v65 = vadd.f32 %v51, %v64
    %v66 = vrot.slane %v65, 2
    %v67 = vadd.f32 %v65, %v66
    %v68 = vrot.slane %v67, 1
    %v69 = vadd.f32 %v67, %v68
    %v70 = vrot.slane %v52, 4
    %v71 = vadd.f32 %v52, %v70
    %v72 = vrot.slane %v71, 2
    %v73 = vadd.f32 %v71, %v72
    %v74 = vrot.slane %v73, 1
    %v75 = vadd.f32 %v73, %v74
    %v76 = vrot.slane %v53, 4
    %v77 = vadd.f32 %v53, %v76
    %v78 = vrot.slane %v77, 2
    %v79 = vadd.f32 %v77, %v78
    %v80 = vrot.slane %v79, 1
    %v81 = vadd.f32 %v79, %v80
    %v82 = vrot.slane %v54, 4
    %v83 = vadd.f32 %v54, %v82
    %v84 = vrot.slane %v83, 2
    %v85 = vadd.f32 %v83, %v84
    %v86 = vrot.slane %v85, 1
    %v87 = vadd.f32 %v85, %v86
    %v88 = vrot.slane %v55, 4
    %v89 = vadd.f32 %v55, %v88
    %v90 = vrot.slane %v89, 2
    %v91 = vadd.f32 %v89, %v90
    %v92 = vrot.slane %v91, 1
    %v93 = vadd.f32 %v91, %v92
    %v94 = vrot.slane %v56, 4
    %v95 = vadd.f32 %v56, %v94
    %v96 = vrot.slane %v95, 2
    %v97 = vadd.f32 %v95, %v96
    %v98 = vrot.slane %v97, 1
    %v99 = vadd.f32 %v97, %v98
    %v100 = vrot.slane %v57, 4
    %v101 = vadd.f32 %v57, %v100
    %v102 = vrot.slane %v101, 2
    %v103 = vadd.f32 %v101, %v102
    %v104 = vrot.slane %v103, 1
    %v105 = vadd.f32 %v103, %v104
    %v106 = vmul.f32 %v63, 0.125
    %v107 = vmul.f32 %v69, 0.125
    %v108 = vmul.f32 %v75, 0.125
    %v109 = vmul.f32 %v81, 0.125
    %v110 = vmul.f32 %v87, 0.125
    %v111 = vmul.f32 %v93, 0.125
    %v112 = vmul.f32 %v99, 0.125
    %v113 = vmul.f32 %v105, 0.125
    %vm122 = vcmask 1041409
    %v123 = vsel %vm122, %v107, %v106
    %vm124 = vcmask 1042434
    %v125 = vsel %vm124, %v108, %v123
    %vm126 = vcmask 1043459
    %v127 = vsel %vm126, %v109, %v125
    %vm128 = vcmask 1044484
    %v129 = vsel %vm128, %v110, %v127
    %vm130 = vcmask 1045509
    %v131 = vsel %vm130, %v111, %v129
    %vm132 = vcmask 1046534
    %v133 = vsel %vm132, %v112, %v131
    %vm134 = vcmask 1047559
    %v135 = vsel %vm134, %v113, %v133
    %137 = vst [vmem:[%s6] sm:$0xff] %v135
    %v138 = vld [vmem:[#allocation2] sm:$0xff]
    %v139 = vld [vmem:[#allocation2 + $0x8] sm:$0xff]
    %v140 = vld [vmem:[#allocation2 + $0x10] sm:$0xff]
    %v141 = vld [vmem:[#allocation2 + $0x18] sm:$0xff]
    %v142 = vld [vmem:[#allocation2 + $0x20] sm:$0xff]
    %v143 = vld [vmem:[#allocation2 + $0x28] sm:$0xff]
    %v144 = vld [vmem:[#allocation2 + $0x30] sm:$0xff]
    %v145 = vld [vmem:[#allocation2 + $0x38] sm:$0xff]
    %v146 = vld [vmem:[#allocation2 + $0x40] sm:$0xff]
    %v147 = vld [vmem:[#allocation2 + $0x48] sm:$0xff]
    %v148 = vld [vmem:[#allocation2 + $0x50] sm:$0xff]
    %v149 = vld [vmem:[#allocation2 + $0x58] sm:$0xff]
    %v150 = vld [vmem:[#allocation2 + $0x60] sm:$0xff]
    %v151 = vld [vmem:[#allocation2 + $0x68] sm:$0xff]
    %v152 = vld [vmem:[#allocation2 + $0x70] sm:$0xff]
    %v153 = vld [vmem:[#allocation2 + $0x78] sm:$0xff]
    %v154 = vld [vmem:[%s2] sm:$0x1]
    %v156 = vlaneseq
    %v157 = vshrl.u32 %v156, 7
    %v158 = vsub.s32 0, %v157
    %v159 = vrot.slane %v154, %v158
    %161 = vmatprep.subr.mxu0 0.0
    %162 = vmatpush1.msra.mxu0 %v138
    %163 = vmatprep.subr.mxu0 0.0
    %164 = vmatpush1.msra.mxu0 %v139
    %165 = vmatprep.subr.mxu0 0.0
    %166 = vmatpush1.msra.mxu0 %v140
    %167 = vmatprep.subr.mxu0 0.0
    %168 = vmatpush1.msra.mxu0 %v141
    %169 = vmatprep.subr.mxu0 0.0
    %170 = vmatpush1.msra.mxu0 %v142
    %171 = vmatprep.subr.mxu0 0.0
    %172 = vmatpush1.msra.mxu0 %v143
    %173 = vmatprep.subr.mxu0 0.0
    %174 = vmatpush1.msra.mxu0 %v144
    %175 = vmatprep.subr.mxu0 0.0
    %176 = vmatpush1.msra.mxu0 %v145
    %177 = vmatprep.subr.mxu0 0.0
    %178 = vmatpush1.msra.mxu0 %v146
    %179 = vmatprep.subr.mxu0 0.0
    %180 = vmatpush1.msra.mxu0 %v147
    %181 = vmatprep.subr.mxu0 0.0
    %182 = vmatpush1.msra.mxu0 %v148
    %183 = vmatprep.subr.mxu0 0.0
    %184 = vmatpush1.msra.mxu0 %v149
    %185 = vmatprep.subr.mxu0 0.0
    %186 = vmatpush1.msra.mxu0 %v150
    %187 = vmatprep.subr.mxu0 0.0
    %188 = vmatpush1.msra.mxu0 %v151
    %189 = vmatprep.subr.mxu0 0.0
    %190 = vmatpush1.msra.mxu0 %v152
    %191 = vmatprep.subr.mxu0 0.0
    %192 = vmatpush1.msra.mxu0 %v153
    %193 = vmatprep.subr.mxu0 0.0
    %194 = vmatpush1.msra.mxu0 0.0
    %195 = vmatprep.subr.mxu0 0.0
    %196 = vmatpush1.msra.mxu0 0.0
    %197 = vmatprep.subr.mxu0 0.0
    %198 = vmatpush1.msra.mxu0 0.0
    %199 = vmatprep.subr.mxu0 0.0
    %200 = vmatpush1.msra.mxu0 0.0
    %201 = vmatprep.subr.mxu0 0.0
    %202 = vmatpush1.msra.mxu0 0.0
    %203 = vmatprep.subr.mxu0 0.0
    %204 = vmatpush1.msra.mxu0 0.0
    %205 = vmatprep.subr.mxu0 0.0
    %206 = vmatpush1.msra.mxu0 0.0
    %207 = vmatprep.subr.mxu0 0.0
    %208 = vmatpush1.msra.mxu0 0.0
    %209 = vmatprep.subr.mxu0 0.0
    %210 = vmatpush1.msra.mxu0 0.0
    %211 = vmatprep.subr.mxu0 0.0
    %212 = vmatpush1.msra.mxu0 0.0
    %213 = vmatprep.subr.mxu0 0.0
    %214 = vmatpush1.msra.mxu0 0.0
    %215 = vmatprep.subr.mxu0 0.0
    %216 = vmatpush1.msra.mxu0 0.0
    %217 = vmatprep.subr.mxu0 0.0
    %218 = vmatpush1.msra.mxu0 0.0
    %219 = vmatprep.subr.mxu0 0.0
    %220 = vmatpush1.msra.mxu0 0.0
    %221 = vmatprep.subr.mxu0 0.0
    %222 = vmatpush1.msra.mxu0 0.0
    %223 = vmatprep.subr.mxu0 0.0
    %224 = vmatpush1.msra.mxu0 0.0
    %225 = vmatprep.mubr.f32.mxu0 0.0
    %226 = vmatmul.mubr.f32.gmra.mrb[0].mxu0 %v135
    %v227 = vpop.f32.mrb[0].mxu0
    %v228 = vadd.f32 %v159, %v227
    %v229 = vpop.f32.mrb[0].mxu0
    %230 = vdwg.mxu0
    %v231 = vmax.f32 %v228, 0.0
    %v232 = vld [vmem:[#allocation4] sm:$0xff]
    %v233 = vld [vmem:[#allocation4 + $0x8] sm:$0xff]
    %v234 = vld [vmem:[#allocation4 + $0x10] sm:$0xff]
    %v235 = vld [vmem:[#allocation4 + $0x18] sm:$0xff]
    %v236 = vld [vmem:[#allocation4 + $0x20] sm:$0xff]
    %v237 = vld [vmem:[#allocation4 + $0x28] sm:$0xff]
    %v238 = vld [vmem:[#allocation4 + $0x30] sm:$0xff]
    %v239 = vld [vmem:[#allocation4 + $0x38] sm:$0xff]
    %v240 = vld [vmem:[#allocation4 + $0x40] sm:$0xff]
    %v241 = vld [vmem:[#allocation4 + $0x48] sm:$0xff]
    %v242 = vld [vmem:[#allocation4 + $0x50] sm:$0xff]
    %v243 = vld [vmem:[#allocation4 + $0x58] sm:$0xff]
    %v244 = vld [vmem:[#allocation4 + $0x60] sm:$0xff]
    %v245 = vld [vmem:[#allocation4 + $0x68] sm:$0xff]
    %v246 = vld [vmem:[#allocation4 + $0x70] sm:$0xff]
    %v247 = vld [vmem:[#allocation4 + $0x78] sm:$0xff]
    %v248 = vld [vmem:[%s4] sm:$0x1]
    %v250 = vlaneseq
    %v251 = vshrl.u32 %v250, 7
    %v252 = vsub.s32 0, %v251
    %v253 = vrot.slane %v248, %v252
    %255 = vmatprep.subr.mxu0 0.0
    %256 = vmatpush1.msra.mxu0 %v232
    %257 = vmatprep.subr.mxu0 0.0
    %258 = vmatpush1.msra.mxu0 %v233
    %259 = vmatprep.subr.mxu0 0.0
    %260 = vmatpush1.msra.mxu0 %v234
    %261 = vmatprep.subr.mxu0 0.0
    %262 = vmatpush1.msra.mxu0 %v235
    %263 = vmatprep.subr.mxu0 0.0
    %264 = vmatpush1.msra.mxu0 %v236
    %265 = vmatprep.subr.mxu0 0.0
    %266 = vmatpush1.msra.mxu0 %v237
    %267 = vmatprep.subr.mxu0 0.0
    %268 = vmatpush1.msra.mxu0 %v238
    %269 = vmatprep.subr.mxu0 0.0
    %270 = vmatpush1.msra.mxu0 %v239
    %271 = vmatprep.subr.mxu0 0.0
    %272 = vmatpush1.msra.mxu0 %v240
    %273 = vmatprep.subr.mxu0 0.0
    %274 = vmatpush1.msra.mxu0 %v241
    %275 = vmatprep.subr.mxu0 0.0
    %276 = vmatpush1.msra.mxu0 %v242
    %277 = vmatprep.subr.mxu0 0.0
    %278 = vmatpush1.msra.mxu0 %v243
    %279 = vmatprep.subr.mxu0 0.0
    %280 = vmatpush1.msra.mxu0 %v244
    %281 = vmatprep.subr.mxu0 0.0
    %282 = vmatpush1.msra.mxu0 %v245
    %283 = vmatprep.subr.mxu0 0.0
    %284 = vmatpush1.msra.mxu0 %v246
    %285 = vmatprep.subr.mxu0 0.0
    %286 = vmatpush1.msra.mxu0 %v247
    %287 = vmatprep.subr.mxu0 0.0
    %288 = vmatpush1.msra.mxu0 0.0
    %289 = vmatprep.subr.mxu0 0.0
    %290 = vmatpush1.msra.mxu0 0.0
    %291 = vmatprep.subr.mxu0 0.0
    %292 = vmatpush1.msra.mxu0 0.0
    %293 = vmatprep.subr.mxu0 0.0
    %294 = vmatpush1.msra.mxu0 0.0
    %295 = vmatprep.subr.mxu0 0.0
    %296 = vmatpush1.msra.mxu0 0.0
    %297 = vmatprep.subr.mxu0 0.0
    %298 = vmatpush1.msra.mxu0 0.0
    %299 = vmatprep.subr.mxu0 0.0
    %300 = vmatpush1.msra.mxu0 0.0
    %301 = vmatprep.subr.mxu0 0.0
    %302 = vmatpush1.msra.mxu0 0.0
    %303 = vmatprep.subr.mxu0 0.0
    %304 = vmatpush1.msra.mxu0 0.0
    %305 = vmatprep.subr.mxu0 0.0
    %306 = vmatpush1.msra.mxu0 0.0
    %307 = vmatprep.subr.mxu0 0.0
    %308 = vmatpush1.msra.mxu0 0.0
    %309 = vmatprep.subr.mxu0 0.0
    %310 = vmatpush1.msra.mxu0 0.0
    %311 = vmatprep.subr.mxu0 0.0
    %312 = vmatpush1.msra.mxu0 0.0
    %313 = vmatprep.subr.mxu0 0.0
    %314 = vmatpush1.msra.mxu0 0.0
    %315 = vmatprep.subr.mxu0 0.0
    %316 = vmatpush1.msra.mxu0 0.0
    %317 = vmatprep.subr.mxu0 0.0
    %318 = vmatpush1.msra.mxu0 0.0
    %319 = vmatprep.mubr.f32.mxu0 0.0
    %320 = vmatmul.mubr.f32.gmra.mrb[0].mxu0 %v231
    %v321 = vpop.f32.mrb[0].mxu0
    %v322 = vadd.f32 %v253, %v321
    %v323 = vpop.f32.mrb[0].mxu0
    %324 = vdwg.mxu0
    %325 = vst [vmem:[%s5] sm:$0xff] %v322
    // Predicated region
    $region30: #{forward.1} parent=1 // pred_check
      _
    $region31: #{forward.1} parent=1 // pred_check_branch
      %327 = sbr.rel (0) target = $region33
    $region32: #{forward.1} parent=1 // pred_region
      _
    $region33: #{forward.1} parent=1 // pred_fallthru
      _
    // Predicated region
    $region34: #{forward.1} parent=1 // pred_check
      _
    $region35: #{forward.1} parent=1 // pred_check_branch
      %329 = sbr.rel (0) target = $region37
    $region36: #{forward.1} parent=1 // pred_region
      _
    $region37: #{forward.1} parent=1 // pred_fallthru
      _
    // Predicated region
    $region38: #{forward.1} parent=1 // pred_check
      _
    $region39: #{forward.1} parent=1 // pred_check_branch
      %331 = sbr.rel (0) target = $region41
    $region40: #{forward.1} parent=1 // pred_region
      _
    $region41: #{forward.1} parent=1 // pred_fallthru
      _
    // Predicated region
    $region42: #{forward.1} parent=1 // pred_check
      _
    $region43: #{forward.1} parent=1 // pred_check_branch
      %333 = sbr.rel (0) target = $region45
    $region44: #{forward.1} parent=1 // pred_region
      _
    $region45: #{forward.1} parent=1 // pred_fallthru
      _
    %334 = vsyncpa [#allocation3], 1
    %335 = vsyncpa [#allocation5], 1

</llo_original>
